<compile_context>
chip_gen: v5e
topology: v5e:2x2
jax: 0.10.0
libtpu: 0.0.40
codegen_flags: <defaults>
</compile_context>

<pallas_src>
import functools
import math

import jax
import jax.numpy as jnp
from jax import lax
from jax.experimental import pallas as pl
from jax.experimental.pallas import tpu as pltpu

LANES = 128
MAX_BLOCK_ROWS = 4096        # 4096*128*4 B = 2 MiB per f32 stream tile (x2 streams, x2 buffers)
CHUNK_ROWS = 128             # in-kernel sub-tile: 64 KiB per f32 stream -> no big VMEM temps
NUM_SPLITS = 2               # leading "parallel" grid axis (feeds both TCs on v7x)
VMEM_LIMIT_BYTES = 32 * 1024 * 1024

ALPHA = 0.8
CE_RATIO = 0.5
EPS = 1e-07
A1 = ALPHA                     # weight on      t * log(p)
A2 = ALPHA * (1.0 - ALPHA)     # weight on  (1-t) * log(1-p)   (constants folded)
_LOG1M_EPS = math.log1p(-EPS)  # per-element CE contribution of a zero-padded element, / A2


def _combo_loss_kernel(x_ref, t_ref, it_ref, sxt_ref, ce_ref, *,
                       rows, block_rows, chunk_rows, steps_per_split):
    """One grid step: fold a (block_rows, 128) tile of x/t into (8,128) partial sums."""
    s = pl.program_id(0)     # parallel split
    i = pl.program_id(1)     # reduction step within the split
    n_chunks = block_rows // chunk_rows

    @pl.when(i == 0)
    def _init():
        it_ref[...] = jnp.zeros_like(it_ref)
        sxt_ref[...] = jnp.zeros_like(sxt_ref)
        ce_ref[...] = jnp.zeros_like(ce_ref)

    # Logical (unclamped) block position.  All quantities are row counts (= n / 128),
    # so int32 only overflows for n >= 2**38 elements.
    base_row = (s * steps_per_split + i) * block_rows

    def fold(v):
        # (chunk_rows, 128) -> (8, 128): layout-compatible reshape + pure VPU adds.
        return jnp.sum(v.reshape(-1, 8, LANES), axis=0)

    def chunk_body(c, masked):
        if isinstance(c, int):
            r0 = c * chunk_rows
        else:
            r0 = pl.multiple_of(c * chunk_rows, chunk_rows)
        x = x_ref[pl.ds(r0, chunk_rows), :].astype(jnp.float32)
        t = t_ref[pl.ds(r0, chunk_rows), :].astype(jnp.float32)

        it = x * t                      # intersection partial
        sxt = x + t                     # sum(inputs) + sum(targets) partial (merged)
        xc = jnp.clip(x, EPS, 1.0 - EPS)
        # Inner bracket of the PyTorch CE term (negated + averaged in the epilogue).
        ce = A1 * (t * jnp.log(xc)) + A2 * ((1.0 - t) * jnp.log(1.0 - xc))

        if masked:
            # Only whole rows can be invalid (boundary / phantom blocks); mask by
            # block-relative row index against the remaining valid-row count.
            lim = rows - base_row - r0
            row_id = lax.broadcasted_iota(jnp.int32, (chunk_rows, LANES), 0)
            valid = row_id < lim
            it = jnp.where(valid, it, 0.0)
            sxt = jnp.where(valid, sxt, 0.0)
            ce = jnp.where(valid, ce, 0.0)

        it_ref[...] += fold(it)
        sxt_ref[...] += fold(sxt)
        ce_ref[...] += fold(ce)

    def run(masked):
        if n_chunks == 1:
            chunk_body(0, masked)
        else:
            @pl.loop(0, n_chunks)
            def _(c):
                chunk_body(c, masked)

    is_full = base_row + block_rows <= rows

    @pl.when(is_full)
    def _full_block():
        run(masked=False)            # hot path: no masking work at all

    @pl.when(jnp.logical_not(is_full))
    def _tail_block():
        run(masked=True)             # boundary / phantom blocks (at most once per split)


def combo_loss(inputs, targets, smooth=1e-05, max_block_rows=MAX_BLOCK_ROWS):
    """Pallas implementation of ComboLoss.forward. Returns a scalar (f32)."""
    x = inputs.reshape(-1)
    t = targets.reshape(-1)
    n = x.shape[0]

    # Stream native dtypes (no wrapper up-cast copies) when directly tileable.
    # TODO(synk): stream int8/bool targets natively (needs 32-row sublane alignment).
    def as_stream(a):
        if a.dtype == jnp.float32 or a.dtype == jnp.bfloat16:
            return a
        return a.astype(jnp.float32)

    x = as_stream(x)
    t = as_stream(t)

    sub = 16 if (x.dtype == jnp.bfloat16 or t.dtype == jnp.bfloat16) else 8
    rows = pl.cdiv(n, LANES)
    if rows < sub:
        # Tiny input: below minimum tile geometry; not worth a kernel launch.
        return combo_loss_ref(inputs, targets, smooth)

    pad = rows * LANES - n
    if pad:
        # TODO(synk): a manual-DMA bulk+tail scheme would avoid this copy for
        # n % 128 != 0; the analytic CE correction below keeps the result exact.
        x = jnp.pad(x, (0, pad))
        t = jnp.pad(t, (0, pad))

    block_rows = max(sub, (min(max_block_rows, rows) // sub) * sub)
    chunk_rows = CHUNK_ROWS if block_rows % CHUNK_ROWS == 0 else block_rows
    num_blocks = pl.cdiv(rows, block_rows)
    num_splits = NUM_SPLITS if num_blocks >= NUM_SPLITS else 1
    steps_per_split = pl.cdiv(num_blocks, num_splits)

    x2 = x.reshape(rows, LANES)
    t2 = t.reshape(rows, LANES)

    def in_index(s, i):
        blk = s * steps_per_split + i
        if num_splits * steps_per_split > num_blocks:
            # Phantom grid positions (odd block count) re-read the last real block;
            # the kernel masks their contribution to zero via the logical base_row.
            blk = jnp.minimum(blk, num_blocks - 1)
        return (blk, 0)

    def out_index(s, i):
        return (s, 0)

    kernel = functools.partial(_combo_loss_kernel,
                               rows=rows, block_rows=block_rows,
                               chunk_rows=chunk_rows,
                               steps_per_split=steps_per_split)

    part_shape = jax.ShapeDtypeStruct((num_splits * 8, LANES), jnp.float32)
    in_spec = pl.BlockSpec((block_rows, LANES), in_index)
    out_spec = pl.BlockSpec((8, LANES), out_index)

    cost = pl.CostEstimate(
        flops=14 * n,
        transcendentals=2 * n,
        bytes_accessed=(x2.size * x2.dtype.itemsize + t2.size * t2.dtype.itemsize
                        + 3 * num_splits * 8 * LANES * 4))

    it_p, sxt_p, ce_p = pl.pallas_call(
        kernel,
        out_shape=(part_shape, part_shape, part_shape),
        grid=(num_splits, steps_per_split),
        in_specs=[in_spec, in_spec],
        out_specs=(out_spec, out_spec, out_spec),
        compiler_params=pltpu.CompilerParams(
            # TODO(synk): on v7x, switch the leading axis to pltpu.CORE_PARALLEL if
            # "parallel" does not shard the split across the two TensorCores.
            dimension_semantics=("parallel", "arbitrary"),
            vmem_limit_bytes=VMEM_LIMIT_BYTES),
        cost_estimate=cost,
    )(x2, t2)

    # Tiny JAX epilogue: final reductions + scalar combo formula.
    inter = jnp.sum(it_p)
    sum_xt = jnp.sum(sxt_p)
    # Zero-padded elements contribute exactly A2*log(1-EPS) each to the CE sum and 0
    # to inter / sum_xt; subtract that analytically instead of masking lanes.
    ce_inner = jnp.sum(ce_p) - pad * (A2 * _LOG1M_EPS)

    dice = (2.0 * inter + smooth) / (sum_xt + smooth)
    weighted_ce = -ce_inner / n
    return CE_RATIO * weighted_ce - (1.0 - CE_RATIO) * dice


def combo_loss_ref(inputs, targets, smooth=1e-05):
    """Pure-JAX reference mirroring the PyTorch forward."""
    x = inputs.reshape(-1).astype(jnp.float32)
    t = targets.reshape(-1).astype(jnp.float32)
    inter = jnp.sum(x * t)
    dice = (2.0 * inter + smooth) / (jnp.sum(x) + jnp.sum(t) + smooth)
    xc = jnp.clip(x, EPS, 1.0 - EPS)
    out = -(ALPHA * (t * jnp.log(xc) + (1.0 - ALPHA) * (1.0 - t) * jnp.log(1.0 - xc)))
    weighted_ce = jnp.mean(out)
    return CE_RATIO * weighted_ce - (1.0 - CE_RATIO) * dice


if __name__ == "__main__":
    key = jax.random.PRNGKey(0)
    k1, k2, k3, k4, k5, k6 = jax.random.split(key, 6)

    def check(out, ref, name):
        out = jax.block_until_ready(out)
        assert jnp.allclose(out, ref, atol=5e-5, rtol=1e-4), (name, out, ref)

    # Main case: probabilities vs binary mask, (B, C, H, W) = (2, 4, 16, 16).
    shape = (2, 4, 16, 16)
    inputs = jax.random.uniform(k1, shape, dtype=jnp.float32)
    targets = (jax.random.uniform(k2, shape) > 0.5).astype(jnp.float32)
    check(combo_loss(inputs, targets), combo_loss_ref(inputs, targets), "f32")

    # Native bf16 activations streamed without a wrapper up-cast copy.
    inputs_bf16 = inputs.astype(jnp.bfloat16)
    check(combo_loss(inputs_bf16, targets), combo_loss_ref(inputs_bf16, targets), "bf16")

    # Multi-block + odd block count (phantom clamp) + masked boundary block.
    shape3 = (3, 3, 16, 16)   # 2304 elems = 18 rows -> 3 blocks of 8 rows
    a3 = jax.random.uniform(k3, shape3, dtype=jnp.float32)
    b3 = (jax.random.uniform(k4, shape3) > 0.5).astype(jnp.float32)
    check(combo_loss(a3, b3, max_block_rows=8), combo_loss_ref(a3, b3), "odd-blocks")

    # Chunked inner loop + partially masked chunk + 2-way split.
    shape4 = (2, 5, 64, 64)   # 40960 elems = 320 rows -> 2 blocks of 256 rows
    a4 = jax.random.uniform(k5, shape4, dtype=jnp.float32)
    b4 = (jax.random.uniform(k6, shape4) > 0.5).astype(jnp.float32)
    check(combo_loss(a4, b4, max_block_rows=256), combo_loss_ref(a4, b4), "chunked")

    print("KERNEL_OK")
</pallas_src>

<mosaic_0001>
module attributes {stable_mosaic.version = 11 : i64} {
  func.func @_combo_loss_kernel(%arg0: i32, %arg1: i32, %arg2: memref<16x128xf32, #tpu.memory_space<vmem>>, %arg3: memref<16x128xf32, #tpu.memory_space<vmem>>, %arg4: memref<8x128xf32, #tpu.memory_space<vmem>>, %arg5: memref<8x128xf32, #tpu.memory_space<vmem>>, %arg6: memref<8x128xf32, #tpu.memory_space<vmem>>) attributes {dimension_semantics = [#tpu.dimension_semantics<parallel>, #tpu.dimension_semantics<arbitrary>], iteration_bounds = array<i64: 1, 1>, scalar_prefetch = 0 : i64, scratch_operands = 0 : i64, tpu.core_type = #tpu.core_type<tc>, window_params = [{transform_indices = @transform_0, window_bounds = array<i64: 16, 128>}, {transform_indices = @transform_1, window_bounds = array<i64: 16, 128>}, {transform_indices = @transform_2, window_bounds = array<i64: 8, 128>}, {transform_indices = @transform_3, window_bounds = array<i64: 8, 128>}, {transform_indices = @transform_4, window_bounds = array<i64: 8, 128>}]} {
    %c0_i32 = arith.constant 0 : i32
    %0 = arith.cmpi eq, %arg1, %c0_i32 : i32
    %1 = arith.extui %0 : i1 to i32
    %c0_i32_0 = arith.constant 0 : i32
    %2 = arith.cmpi ne, %1, %c0_i32_0 : i32
    scf.if %2 {
      %cst = arith.constant 0.000000e+00 : f32
      %13 = vector.broadcast %cst : f32 to vector<8x128xf32>
      %c0 = arith.constant 0 : index
      %c0_5 = arith.constant 0 : index
      %14 = vector.load %arg4[%c0, %c0_5] : memref<8x128xf32, #tpu.memory_space<vmem>>, vector<8x128xf32>
      tpu.vector_store %arg4[%c0, %c0_5], %13 {strides = array<i32>} : memref<8x128xf32, #tpu.memory_space<vmem>>, vector<8x128xf32>,
      %cst_6 = arith.constant 0.000000e+00 : f32
      %15 = vector.broadcast %cst_6 : f32 to vector<8x128xf32>
      %c0_7 = arith.constant 0 : index
      %c0_8 = arith.constant 0 : index
      %16 = vector.load %arg5[%c0_7, %c0_8] : memref<8x128xf32, #tpu.memory_space<vmem>>, vector<8x128xf32>
      tpu.vector_store %arg5[%c0_7, %c0_8], %15 {strides = array<i32>} : memref<8x128xf32, #tpu.memory_space<vmem>>, vector<8x128xf32>,
      %cst_9 = arith.constant 0.000000e+00 : f32
      %17 = vector.broadcast %cst_9 : f32 to vector<8x128xf32>
      %c0_10 = arith.constant 0 : index
      %c0_11 = arith.constant 0 : index
      %18 = vector.load %arg6[%c0_10, %c0_11] : memref<8x128xf32, #tpu.memory_space<vmem>>, vector<8x128xf32>
      tpu.vector_store %arg6[%c0_10, %c0_11], %17 {strides = array<i32>} : memref<8x128xf32, #tpu.memory_space<vmem>>, vector<8x128xf32>,
    } else {
    }
    %c1_i32 = arith.constant 1 : i32
    %3 = arith.muli %arg0, %c1_i32 : i32
    %4 = arith.addi %3, %arg1 : i32
    %c16_i32 = arith.constant 16 : i32
    %5 = arith.muli %4, %c16_i32 : i32
    %c16_i32_1 = arith.constant 16 : i32
    %6 = arith.addi %5, %c16_i32_1 : i32
    %c16_i32_2 = arith.constant 16 : i32
    %7 = arith.cmpi sle, %6, %c16_i32_2 : i32
    %8 = arith.extui %7 : i1 to i32
    %c0_i32_3 = arith.constant 0 : i32
    %9 = arith.cmpi ne, %8, %c0_i32_3 : i32
    scf.if %9 {
      %c0 = arith.constant 0 : index
      %c0_5 = arith.constant 0 : index
      %13 = vector.load %arg2[%c0, %c0_5] : memref<16x128xf32, #tpu.memory_space<vmem>>, vector<16x128xf32>
      %c0_6 = arith.constant 0 : index
      %c0_7 = arith.constant 0 : index
      %14 = vector.load %arg3[%c0_6, %c0_7] : memref<16x128xf32, #tpu.memory_space<vmem>>, vector<16x128xf32>
      %15 = arith.mulf %13, %14 : vector<16x128xf32>
      %16 = arith.addf %13, %14 : vector<16x128xf32>
      %cst = arith.constant 1.000000e-07 : f32
      %cst_8 = arith.constant 0.99999988 : f32
      %17 = vector.broadcast %cst : f32 to vector<16x128xf32>
      %18 = arith.maximumf %17, %13 : vector<16x128xf32>
      %19 = vector.broadcast %cst_8 : f32 to vector<16x128xf32>
      %20 = arith.minimumf %19, %18 : vector<16x128xf32>
      %21 = math.log %20 : vector<16x128xf32>
      %22 = arith.mulf %14, %21 : vector<16x128xf32>
      %cst_9 = arith.constant 8.000000e-01 : f32
      %23 = vector.broadcast %cst_9 : f32 to vector<16x128xf32>
      %24 = arith.mulf %23, %22 : vector<16x128xf32>
      %cst_10 = arith.constant 1.000000e+00 : f32
      %25 = vector.broadcast %cst_10 : f32 to vector<16x128xf32>
      %26 = arith.subf %25, %14 : vector<16x128xf32>
      %cst_11 = arith.constant 1.000000e+00 : f32
      %27 = vector.broadcast %cst_11 : f32 to vector<16x128xf32>
      %28 = arith.subf %27, %20 : vector<16x128xf32>
      %29 = math.log %28 : vector<16x128xf32>
      %30 = arith.mulf %26, %29 : vector<16x128xf32>
      %cst_12 = arith.constant 1.600000e-01 : f32
      %31 = vector.broadcast %cst_12 : f32 to vector<16x128xf32>
      %32 = arith.mulf %31, %30 : vector<16x128xf32>
      %33 = arith.addf %24, %32 : vector<16x128xf32>
      %c0_13 = arith.constant 0 : index
      %c0_14 = arith.constant 0 : index
      %34 = vector.load %arg4[%c0_13, %c0_14] : memref<8x128xf32, #tpu.memory_space<vmem>>, vector<8x128xf32>
      %35 = vector.shape_cast %15 : vector<16x128xf32> to vector<2x8x128xf32>
      %cst_15 = arith.constant dense<0.000000e+00> : vector<8x128xf32>
      %36 = vector.multi_reduction <add>, %35, %cst_15 [0] : vector<2x8x128xf32> to vector<8x128xf32>
      %37 = arith.addf %34, %36 : vector<8x128xf32>
      %c0_16 = arith.constant 0 : index
      %c0_17 = arith.constant 0 : index
      %38 = vector.load %arg4[%c0_16, %c0_17] : memref<8x128xf32, #tpu.memory_space<vmem>>, vector<8x128xf32>
      tpu.vector_store %arg4[%c0_16, %c0_17], %37 {strides = array<i32>} : memref<8x128xf32, #tpu.memory_space<vmem>>, vector<8x128xf32>,
      %c0_18 = arith.constant 0 : index
      %c0_19 = arith.constant 0 : index
      %39 = vector.load %arg5[%c0_18, %c0_19] : memref<8x128xf32, #tpu.memory_space<vmem>>, vector<8x128xf32>
      %40 = vector.shape_cast %16 : vector<16x128xf32> to vector<2x8x128xf32>
      %cst_20 = arith.constant dense<0.000000e+00> : vector<8x128xf32>
      %41 = vector.multi_reduction <add>, %40, %cst_20 [0] : vector<2x8x128xf32> to vector<8x128xf32>
      %42 = arith.addf %39, %41 : vector<8x128xf32>
      %c0_21 = arith.constant 0 : index
      %c0_22 = arith.constant 0 : index
      %43 = vector.load %arg5[%c0_21, %c0_22] : memref<8x128xf32, #tpu.memory_space<vmem>>, vector<8x128xf32>
      tpu.vector_store %arg5[%c0_21, %c0_22], %42 {strides = array<i32>} : memref<8x128xf32, #tpu.memory_space<vmem>>, vector<8x128xf32>,
      %c0_23 = arith.constant 0 : index
      %c0_24 = arith.constant 0 : index
      %44 = vector.load %arg6[%c0_23, %c0_24] : memref<8x128xf32, #tpu.memory_space<vmem>>, vector<8x128xf32>
      %45 = vector.shape_cast %33 : vector<16x128xf32> to vector<2x8x128xf32>
      %cst_25 = arith.constant dense<0.000000e+00> : vector<8x128xf32>
      %46 = vector.multi_reduction <add>, %45, %cst_25 [0] : vector<2x8x128xf32> to vector<8x128xf32>
      %47 = arith.addf %44, %46 : vector<8x128xf32>
      %c0_26 = arith.constant 0 : index
      %c0_27 = arith.constant 0 : index
      %48 = vector.load %arg6[%c0_26, %c0_27] : memref<8x128xf32, #tpu.memory_space<vmem>>, vector<8x128xf32>
      tpu.vector_store %arg6[%c0_26, %c0_27], %47 {strides = array<i32>} : memref<8x128xf32, #tpu.memory_space<vmem>>, vector<8x128xf32>,
    } else {
    }
    %true = arith.constant true
    %10 = arith.xori %7, %true : i1
    %11 = arith.extui %10 : i1 to i32
    %c0_i32_4 = arith.constant 0 : i32
    %12 = arith.cmpi ne, %11, %c0_i32_4 : i32
    scf.if %12 {
      %c0 = arith.constant 0 : index
      %c0_5 = arith.constant 0 : index
      %13 = vector.load %arg2[%c0, %c0_5] : memref<16x128xf32, #tpu.memory_space<vmem>>, vector<16x128xf32>
      %c0_6 = arith.constant 0 : index
      %c0_7 = arith.constant 0 : index
      %14 = vector.load %arg3[%c0_6, %c0_7] : memref<16x128xf32, #tpu.memory_space<vmem>>, vector<16x128xf32>
      %15 = arith.mulf %13, %14 : vector<16x128xf32>
      %16 = arith.addf %13, %14 : vector<16x128xf32>
      %cst = arith.constant 1.000000e-07 : f32
      %cst_8 = arith.constant 0.99999988 : f32
      %17 = vector.broadcast %cst : f32 to vector<16x128xf32>
      %18 = arith.maximumf %17, %13 : vector<16x128xf32>
      %19 = vector.broadcast %cst_8 : f32 to vector<16x128xf32>
      %20 = arith.minimumf %19, %18 : vector<16x128xf32>
      %21 = math.log %20 : vector<16x128xf32>
      %22 = arith.mulf %14, %21 : vector<16x128xf32>
      %cst_9 = arith.constant 8.000000e-01 : f32
      %23 = vector.broadcast %cst_9 : f32 to vector<16x128xf32>
      %24 = arith.mulf %23, %22 : vector<16x128xf32>
      %cst_10 = arith.constant 1.000000e+00 : f32
      %25 = vector.broadcast %cst_10 : f32 to vector<16x128xf32>
      %26 = arith.subf %25, %14 : vector<16x128xf32>
      %cst_11 = arith.constant 1.000000e+00 : f32
      %27 = vector.broadcast %cst_11 : f32 to vector<16x128xf32>
      %28 = arith.subf %27, %20 : vector<16x128xf32>
      %29 = math.log %28 : vector<16x128xf32>
      %30 = arith.mulf %26, %29 : vector<16x128xf32>
      %cst_12 = arith.constant 1.600000e-01 : f32
      %31 = vector.broadcast %cst_12 : f32 to vector<16x128xf32>
      %32 = arith.mulf %31, %30 : vector<16x128xf32>
      %33 = arith.addf %24, %32 : vector<16x128xf32>
      %c16_i32_13 = arith.constant 16 : i32
      %34 = arith.subi %c16_i32_13, %5 : i32
      %c0_i32_14 = arith.constant 0 : i32
      %35 = arith.subi %34, %c0_i32_14 : i32
      %36 = tpu.iota {dimensions = array<i32: 0>} : vector<16x128xi32>
      %37 = vector.broadcast %35 : i32 to vector<16x128xi32>
      %38 = arith.cmpi slt, %36, %37 : vector<16x128xi32>
      %cst_15 = arith.constant 0.000000e+00 : f32
      %39 = vector.broadcast %cst_15 : f32 to vector<16x128xf32>
      %40 = arith.select %38, %15, %39 : vector<16x128xi1>, vector<16x128xf32>
      %cst_16 = arith.constant 0.000000e+00 : f32
      %41 = vector.broadcast %cst_16 : f32 to vector<16x128xf32>
      %42 = arith.select %38, %16, %41 : vector<16x128xi1>, vector<16x128xf32>
      %cst_17 = arith.constant 0.000000e+00 : f32
      %43 = vector.broadcast %cst_17 : f32 to vector<16x128xf32>
      %44 = arith.select %38, %33, %43 : vector<16x128xi1>, vector<16x128xf32>
      %c0_18 = arith.constant 0 : index
      %c0_19 = arith.constant 0 : index
      %45 = vector.load %arg4[%c0_18, %c0_19] : memref<8x128xf32, #tpu.memory_space<vmem>>, vector<8x128xf32>
      %46 = vector.shape_cast %40 : vector<16x128xf32> to vector<2x8x128xf32>
      %cst_20 = arith.constant dense<0.000000e+00> : vector<8x128xf32>
      %47 = vector.multi_reduction <add>, %46, %cst_20 [0] : vector<2x8x128xf32> to vector<8x128xf32>
      %48 = arith.addf %45, %47 : vector<8x128xf32>
      %c0_21 = arith.constant 0 : index
      %c0_22 = arith.constant 0 : index
      %49 = vector.load %arg4[%c0_21, %c0_22] : memref<8x128xf32, #tpu.memory_space<vmem>>, vector<8x128xf32>
      tpu.vector_store %arg4[%c0_21, %c0_22], %48 {strides = array<i32>} : memref<8x128xf32, #tpu.memory_space<vmem>>, vector<8x128xf32>,
      %c0_23 = arith.constant 0 : index
      %c0_24 = arith.constant 0 : index
      %50 = vector.load %arg5[%c0_23, %c0_24] : memref<8x128xf32, #tpu.memory_space<vmem>>, vector<8x128xf32>
      %51 = vector.shape_cast %42 : vector<16x128xf32> to vector<2x8x128xf32>
      %cst_25 = arith.constant dense<0.000000e+00> : vector<8x128xf32>
      %52 = vector.multi_reduction <add>, %51, %cst_25 [0] : vector<2x8x128xf32> to vector<8x128xf32>
      %53 = arith.addf %50, %52 : vector<8x128xf32>
      %c0_26 = arith.constant 0 : index
      %c0_27 = arith.constant 0 : index
      %54 = vector.load %arg5[%c0_26, %c0_27] : memref<8x128xf32, #tpu.memory_space<vmem>>, vector<8x128xf32>
      tpu.vector_store %arg5[%c0_26, %c0_27], %53 {strides = array<i32>} : memref<8x128xf32, #tpu.memory_space<vmem>>, vector<8x128xf32>,
      %c0_28 = arith.constant 0 : index
      %c0_29 = arith.constant 0 : index
      %55 = vector.load %arg6[%c0_28, %c0_29] : memref<8x128xf32, #tpu.memory_space<vmem>>, vector<8x128xf32>
      %56 = vector.shape_cast %44 : vector<16x128xf32> to vector<2x8x128xf32>
      %cst_30 = arith.constant dense<0.000000e+00> : vector<8x128xf32>
      %57 = vector.multi_reduction <add>, %56, %cst_30 [0] : vector<2x8x128xf32> to vector<8x128xf32>
      %58 = arith.addf %55, %57 : vector<8x128xf32>
      %c0_31 = arith.constant 0 : index
      %c0_32 = arith.constant 0 : index
      %59 = vector.load %arg6[%c0_31, %c0_32] : memref<8x128xf32, #tpu.memory_space<vmem>>, vector<8x128xf32>
      tpu.vector_store %arg6[%c0_31, %c0_32], %58 {strides = array<i32>} : memref<8x128xf32, #tpu.memory_space<vmem>>, vector<8x128xf32>,
    } else {
    }
    return
  }
  func.func @transform_0(%arg0: i32, %arg1: i32) -> (i32, i32) {
    %c1_i32 = arith.constant 1 : i32
    %0 = arith.muli %arg0, %c1_i32 : i32
    %1 = arith.addi %0, %arg1 : i32
    %c0_i32 = arith.constant 0 : i32
    %c0_i32_0 = arith.constant 0 : i32
    return %1, %c0_i32 : i32, i32
  }
  func.func @transform_1(%arg0: i32, %arg1: i32) -> (i32, i32) {
    %c1_i32 = arith.constant 1 : i32
    %0 = arith.muli %arg0, %c1_i32 : i32
    %1 = arith.addi %0, %arg1 : i32
    %c0_i32 = arith.constant 0 : i32
    %c0_i32_0 = arith.constant 0 : i32
    return %1, %c0_i32 : i32, i32
  }
  func.func @transform_2(%arg0: i32, %arg1: i32) -> (i32, i32) {
    %c0_i32 = arith.constant 0 : i32
    %c0_i32_0 = arith.constant 0 : i32
    return %arg0, %c0_i32 : i32, i32
  }
  func.func @transform_3(%arg0: i32, %arg1: i32) -> (i32, i32) {
    %c0_i32 = arith.constant 0 : i32
    %c0_i32_0 = arith.constant 0 : i32
    return %arg0, %c0_i32 : i32, i32
  }
  func.func @transform_4(%arg0: i32, %arg1: i32) -> (i32, i32) {
    %c0_i32 = arith.constant 0 : i32
    %c0_i32_0 = arith.constant 0 : i32
    return %arg0, %c0_i32 : i32, i32
  }
}

</mosaic_0001>

<llo_original>
// kernel: tpu_custom_call.1
$region0: #{tpu_custom_call.1}
  #allocation0 [shape = 'u32[]', space=smem, size = 0x4, offset = 0x4, fixed_abs, tag = 'smem constant byte address 0x4 - core index']
  #allocation1 [shape = 'u32[72,128]{1,0:T(1,128)}', space=vmem, size = 0x9000, scoped, tag = 'internal scratch']
  %s0 = inlined_call_operand.hbm [shape: f32[16,128], index: 0, kind: input, shape index: {}]
  %s1 = inlined_call_operand.hbm [shape: f32[16,128], index: 1, kind: input, shape index: {}]
  %s2 = inlined_call_operand.hbm [shape: f32[8,128], index: 2, kind: output, shape index: {0}]
  %s3 = inlined_call_operand.hbm [shape: f32[8,128], index: 3, kind: output, shape index: {1}]
  %s4 = inlined_call_operand.hbm [shape: f32[8,128], index: 4, kind: output, shape index: {2}]
  %5 = xla_tuple %s2, %s3, %s4
  %s6 = sld [smem:[#allocation0]]
  $region54: #{tpu_custom_call.1} parent=0
    _
  %s8 = ssub.s32 1, %s6
  %s9 = scalar_select 0, %s8, %s6
  $region1: #{tpu_custom_call.1} parent=0
    #allocation2 [shape = 'u8[8192]{0}', space=vmem, size = 0x2000, scoped, tag = 'input window, operand 0, single buffered']
    #allocation3 [shape = 's32[1]{0}', space=sflag, size = 0x4, scoped, tag = 'scoped memory for tpu_custom_call.1']
    #allocation4 [shape = 's32[1]{0}', space=sflag, size = 0x4, scoped, tag = 'scoped memory for tpu_custom_call.1']
    #allocation5 [shape = 'u8[8192]{0}', space=vmem, size = 0x2000, scoped, tag = 'input window, operand 1, single buffered']
    #allocation6 [shape = 's32[1]{0}', space=sflag, size = 0x4, scoped, tag = 'scoped memory for tpu_custom_call.1']
    #allocation7 [shape = 'u8[4096]{0}', space=vmem, size = 0x1000, scoped, tag = 'output window, operand 0, single buffered']
    #allocation8 [shape = 'u8[4096]{0}', space=vmem, size = 0x1000, scoped, tag = 'output window, operand 1, single buffered']
    #allocation9 [shape = 's32[1]{0}', space=sflag, size = 0x4, scoped, tag = 'scoped memory for tpu_custom_call.1']
    #allocation10 [shape = 'u8[4096]{0}', space=vmem, size = 0x1000, scoped, tag = 'output window, operand 2, single buffered']
    %10 = vsyncpa [#allocation3], 0
    %11 = vsyncpa [#allocation6], 0
    %12 = vsyncpa [#allocation4], 0
    %13 = vsyncpa [#allocation9], 0
    // Predicated region
    $region2: #{tpu_custom_call.1} parent=1 // pred_check
      _
    $region3: #{tpu_custom_call.1} parent=1 // pred_check_branch
      %15 = sbr.rel (0) target = $region5
    $region4: #{tpu_custom_call.1} parent=1 // pred_region
      %s16 = sadd.s32 0, 0
      %s17 = smul.u32 2, %s16
      %19 = vsyncadd [#allocation3], 0
      %s20 = smul.addr %s17, 8
      %s21 = scalar_lea.hbm %s0, %s20
      %s22 = sshll.u32 %s21, 4
      %s23 = int_to_ptr.hbm [resolvable:$true] %s22
      %s24 = sshll.u32 [#allocation2], 4
      %s25 = int_to_ptr.vmem [resolvable:$true] %s24
      %30 = dma.hbm_to_vmem [thread:$0]  %s23, 256, %s25, [#allocation3], 128, 128, 8
    $region5: #{tpu_custom_call.1} parent=1 // pred_fallthru
      _
    // Predicated region
    $region6: #{tpu_custom_call.1} parent=1 // pred_check
      _
    $region7: #{tpu_custom_call.1} parent=1 // pred_check_branch
      %32 = sbr.rel (0) target = $region9
    $region8: #{tpu_custom_call.1} parent=1 // pred_region
      %s33 = sadd.s32 0, 0
      %s34 = smul.u32 2, %s33
      %36 = vsyncadd [#allocation6], 0
      %s37 = smul.addr %s34, 8
      %s38 = scalar_lea.hbm %s1, %s37
      %s39 = sshll.u32 %s38, 4
      %s40 = int_to_ptr.hbm [resolvable:$true] %s39
      %s41 = sshll.u32 [#allocation5], 4
      %s42 = int_to_ptr.vmem [resolvable:$true] %s41
      %47 = dma.hbm_to_vmem [thread:$0]  %s40, 256, %s42, [#allocation6], 128, 128, 8
    $region9: #{tpu_custom_call.1} parent=1 // pred_fallthru
      _
    // Predicated region
    $region10: #{tpu_custom_call.1} parent=1 // pred_check
      _
    $region11: #{tpu_custom_call.1} parent=1 // pred_check_branch
      %49 = sbr.rel (0) target = $region13
    $region12: #{tpu_custom_call.1} parent=1 // pred_region
      %51 = dma.done [#allocation3], 256
    $region13: #{tpu_custom_call.1} parent=1 // pred_fallthru
      _
    // Predicated region
    $region14: #{tpu_custom_call.1} parent=1 // pred_check
      _
    $region15: #{tpu_custom_call.1} parent=1 // pred_check_branch
      %53 = sbr.rel (0) target = $region17
    $region16: #{tpu_custom_call.1} parent=1 // pred_region
      %55 = dma.done [#allocation6], 256
    $region17: #{tpu_custom_call.1} parent=1 // pred_fallthru
      _
    %s56 = sadd.s32 0, 0
    %s57 = smul.u32 2, %s56
    %s58 = sadd.s32 0, 0
    %s59 = smul.u32 2, %s58
    %p60 = scmp.eq.s32.totalorder 0, 0
    // Predicated region
    $region18: #{tpu_custom_call.1} parent=1 // pred_check
      %p61 = pneg %p60
    $region19: #{tpu_custom_call.1} parent=1 // pred_check_branch
      %63 = sbr.rel (%p61) target = $region21
    $region20: #{tpu_custom_call.1} parent=1 // pred_region
      %64 = vst [vmem:[#allocation7] sm:$0xff] 0.0
      %65 = vst [vmem:[#allocation8] sm:$0xff] 0.0
      %66 = vst [vmem:[#allocation10] sm:$0xff] 0.0
    $region21: #{tpu_custom_call.1} parent=1 // pred_fallthru
      _
    %s67 = sadd.s32 0, 0
    %s68 = smul.u32 %s67, 16
    %s69 = sadd.s32 %s68, 16
    %p70 = scmp.le.s32.totalorder %s69, 16
    // Predicated region
    $region22: #{tpu_custom_call.1} parent=1 // pred_check
      %p71 = pneg %p70
    $region23: #{tpu_custom_call.1} parent=1 // pred_check_branch
      %73 = sbr.rel (%p71) target = $region25
    $region24: #{tpu_custom_call.1} parent=1 // pred_region
      %v74 = vld [vmem:[#allocation2] sm:$0xff]
      %v75 = vld [vmem:[#allocation2 + $0x8] sm:$0xff]
      %v76 = vld [vmem:[#allocation5] sm:$0xff]
      %v77 = vld [vmem:[#allocation5 + $0x8] sm:$0xff]
      %v78 = vmul.f32 %v74, %v76
      %v79 = vmul.f32 %v75, %v77
      %v80 = vadd.f32 %v74, %v76
      %v81 = vadd.f32 %v75, %v77
      %v82 = vmax.f32 %v74, 1e-07
      %v83 = vmax.f32 %v75, 1e-07
      %v84 = vmin.f32 %v82, 0.9999999
      %v85 = vmin.f32 %v83, 0.9999999
      %v86 = vlog2.pop %v84
      %v87 = vmul.f32 %v86, 0.6931472
      %v88 = vlog2.pop %v85
      %v89 = vmul.f32 %v88, 0.6931472
      %v90 = vmul.f32 %v76, %v87
      %v91 = vmul.f32 %v77, %v89
      %v92 = vmul.f32 %v90, 0.8
      %v93 = vmul.f32 %v91, 0.8
      %v94 = vsub.f32 1.0, %v76
      %v95 = vsub.f32 1.0, %v77
      %v96 = vsub.f32 1.0, %v84
      %v97 = vsub.f32 1.0, %v85
      %v98 = vlog2.pop %v96
      %v99 = vmul.f32 %v98, 0.6931472
      %v100 = vlog2.pop %v97
      %v101 = vmul.f32 %v100, 0.6931472
      %v102 = vmul.f32 %v94, %v99
      %v103 = vmul.f32 %v95, %v101
      %v104 = vmul.f32 %v102, 0.16
      %v105 = vmul.f32 %v103, 0.16
      %v106 = vadd.f32 %v92, %v104
      %v107 = vadd.f32 %v93, %v105
      %v108 = vld [vmem:[#allocation7] sm:$0xff]
      %v109 = vadd.f32 %v78, %v79
      %v110 = vadd.f32 %v108, %v109
      %111 = vst [vmem:[#allocation7] sm:$0xff] %v110
      %v112 = vld [vmem:[#allocation8] sm:$0xff]
      %v113 = vadd.f32 %v80, %v81
      %v114 = vadd.f32 %v112, %v113
      %115 = vst [vmem:[#allocation8] sm:$0xff] %v114
      %v116 = vld [vmem:[#allocation10] sm:$0xff]
      %v117 = vadd.f32 %v106, %v107
      %v118 = vadd.f32 %v116, %v117
      %119 = vst [vmem:[#allocation10] sm:$0xff] %v118
    $region25: #{tpu_custom_call.1} parent=1 // pred_fallthru
      _
    %p120 = scmp.gt.s32.totalorder %s69, 16
    // Predicated region
    $region26: #{tpu_custom_call.1} parent=1 // pred_check
      %p121 = pneg %p120
    $region27: #{tpu_custom_call.1} parent=1 // pred_check_branch
      %123 = sbr.rel (%p121) target = $region29
    $region28: #{tpu_custom_call.1} parent=1 // pred_region
      %v124 = vld [vmem:[#allocation2] sm:$0xff]
      %v125 = vld [vmem:[#allocation2 + $0x8] sm:$0xff]
      %v126 = vld [vmem:[#allocation5] sm:$0xff]
      %v127 = vld [vmem:[#allocation5 + $0x8] sm:$0xff]
      %v128 = vmul.f32 %v124, %v126
      %v129 = vmul.f32 %v125, %v127
      %v130 = vadd.f32 %v124, %v126
      %v131 = vadd.f32 %v125, %v127
      %v132 = vmax.f32 %v124, 1e-07
      %v133 = vmax.f32 %v125, 1e-07
      %v134 = vmin.f32 %v132, 0.9999999
      %v135 = vmin.f32 %v133, 0.9999999
      %v136 = vlog2.pop %v134
      %v137 = vmul.f32 %v136, 0.6931472
      %v138 = vlog2.pop %v135
      %v139 = vmul.f32 %v138, 0.6931472
      %v140 = vmul.f32 %v126, %v137
      %v141 = vmul.f32 %v127, %v139
      %v142 = vmul.f32 %v140, 0.8
      %v143 = vmul.f32 %v141, 0.8
      %v144 = vsub.f32 1.0, %v126
      %v145 = vsub.f32 1.0, %v127
      %v146 = vsub.f32 1.0, %v134
      %v147 = vsub.f32 1.0, %v135
      %v148 = vlog2.pop %v146
      %v149 = vmul.f32 %v148, 0.6931472
      %v150 = vlog2.pop %v147
      %v151 = vmul.f32 %v150, 0.6931472
      %v152 = vmul.f32 %v144, %v149
      %v153 = vmul.f32 %v145, %v151
      %v154 = vmul.f32 %v152, 0.16
      %v155 = vmul.f32 %v153, 0.16
      %v156 = vadd.f32 %v142, %v154
      %v157 = vadd.f32 %v143, %v155
      %s158 = ssub.s32 16, %s68
      %v159 = vlaneseq
      %v160 = vshrl.u32 %v159, 7
      %v161 = vadd.s32 %v160, 8
      %v162 = vstv %s158
      %vm163 = vcmp.lt.s32.totalorder %v160, %v162
      %vm164 = vcmp.lt.s32.totalorder %v161, %v162
      %v165 = vsel %vm163, %v128, 0.0
      %v166 = vsel %vm164, %v129, 0.0
      %v167 = vsel %vm163, %v130, 0.0
      %v168 = vsel %vm164, %v131, 0.0
      %v169 = vsel %vm163, %v156, 0.0
      %v170 = vsel %vm164, %v157, 0.0
      %v171 = vld [vmem:[#allocation7] sm:$0xff]
      %v172 = vadd.f32 %v165, %v166
      %v173 = vadd.f32 %v171, %v172
      %174 = vst [vmem:[#allocation7] sm:$0xff] %v173
      %v175 = vld [vmem:[#allocation8] sm:$0xff]
      %v176 = vadd.f32 %v167, %v168
      %v177 = vadd.f32 %v175, %v176
      %178 = vst [vmem:[#allocation8] sm:$0xff] %v177
      %v179 = vld [vmem:[#allocation10] sm:$0xff]
      %v180 = vadd.f32 %v169, %v170
      %v181 = vadd.f32 %v179, %v180
      %182 = vst [vmem:[#allocation10] sm:$0xff] %v181
    $region29: #{tpu_custom_call.1} parent=1 // pred_fallthru
      _
    // Predicated region
    $region30: #{tpu_custom_call.1} parent=1 // pred_check
      _
    $region31: #{tpu_custom_call.1} parent=1 // pred_check_branch
      %184 = sbr.rel (0) target = $region33
    $region32: #{tpu_custom_call.1} parent=1 // pred_region
      %186 = vsyncadd [#allocation4], 0
      %s188 = sshll.u32 [#allocation7], 4
      %s189 = int_to_ptr.vmem [resolvable:$true] %s188
      %s190 = sshll.u32 %s2, 4
      %s191 = int_to_ptr.hbm [resolvable:$true] %s190
      %193 = dma.vmem_to_hbm [thread:$0]  %s189, 128, %s191, [#allocation4]
    $region33: #{tpu_custom_call.1} parent=1 // pred_fallthru
      _
    // Predicated region
    $region34: #{tpu_custom_call.1} parent=1 // pred_check
      _
    $region35: #{tpu_custom_call.1} parent=1 // pred_check_branch
      %195 = sbr.rel (0) target = $region37
    $region36: #{tpu_custom_call.1} parent=1 // pred_region
      %197 = vsyncadd [#allocation9], 0
      %s199 = sshll.u32 [#allocation8], 4
      %s200 = int_to_ptr.vmem [resolvable:$true] %s199
      %s201 = sshll.u32 %s3, 4
      %s202 = int_to_ptr.hbm [resolvable:$true] %s201
      %204 = dma.vmem_to_hbm [thread:$0]  %s200, 128, %s202, [#allocation9]
    $region37: #{tpu_custom_call.1} parent=1 // pred_fallthru
      _
    // Predicated region
    $region38: #{tpu_custom_call.1} parent=1 // pred_check
      _
    $region39: #{tpu_custom_call.1} parent=1 // pred_check_branch
      %206 = sbr.rel (0) target = $region41
    $region40: #{tpu_custom_call.1} parent=1 // pred_region
      %208 = vsyncadd [#allocation9], 0
      %s210 = sshll.u32 [#allocation10], 4
      %s211 = int_to_ptr.vmem [resolvable:$true] %s210
      %s212 = sshll.u32 %s4, 4
      %s213 = int_to_ptr.hbm [resolvable:$true] %s212
      %215 = dma.vmem_to_hbm [thread:$0]  %s211, 128, %s213, [#allocation9]
    $region41: #{tpu_custom_call.1} parent=1 // pred_fallthru
      _
    // Predicated region
    $region42: #{tpu_custom_call.1} parent=1 // pred_check
      _
    $region43: #{tpu_custom_call.1} parent=1 // pred_check_branch
      %217 = sbr.rel (0) target = $region45
    $region44: #{tpu_custom_call.1} parent=1 // pred_region
      %219 = dma.done [#allocation4], 128
    $region45: #{tpu_custom_call.1} parent=1 // pred_fallthru
      _
    // Predicated region
    $region46: #{tpu_custom_call.1} parent=1 // pred_check
      _
    $region47: #{tpu_custom_call.1} parent=1 // pred_check_branch
      %221 = sbr.rel (0) target = $region49
    $region48: #{tpu_custom_call.1} parent=1 // pred_region
      %223 = dma.done [#allocation9], 128
    $region49: #{tpu_custom_call.1} parent=1 // pred_fallthru
      _
    // Predicated region
    $region50: #{tpu_custom_call.1} parent=1 // pred_check
      _
    $region51: #{tpu_custom_call.1} parent=1 // pred_check_branch
      %225 = sbr.rel (0) target = $region53
    $region52: #{tpu_custom_call.1} parent=1 // pred_region
      %227 = dma.done [#allocation9], 128
    $region53: #{tpu_custom_call.1} parent=1 // pred_fallthru
      _
    %228 = vsyncpa [#allocation3], 1
    %229 = vsyncpa [#allocation6], 1
    %230 = vsyncpa [#allocation4], 1
    %231 = vsyncpa [#allocation9], 1

</llo_original>
